<compile_context>
chip_gen: v7x
topology: tpu7x:2x2x1
jax: 0.10.0
libtpu: 0.0.40
codegen_flags: <defaults>
</compile_context>

<pallas_src>
import functools

import jax
import jax.numpy as jnp
from jax.experimental import pallas as pl
from jax.experimental.pallas import tpu as pltpu

IN_FEATURES = 28 * 28      # 784
HIDDEN = 200               # logical hidden width (matches the PyTorch model)
HIDDEN_PAD = 256           # padded to a multiple of 128 lanes / MXU tile
OUT_FEATURES = 1

# > v5e's 16 MiB default scoped-VMEM limit (so tb=2048 compiles there),
# comfortably under v7x's 64 MiB physical VMEM and v5e/v6e's 128 MiB.
_VMEM_LIMIT_BYTES = 48 * 1024 * 1024


def _sigmoid(x):
    # sigmoid(x) == 0.5 * (tanh(x / 2) + 1): tanh lands on the (otherwise idle)
    # EUP slot instead of a VPU f32 divide; mathematically identical.
    return 0.5 * (jnp.tanh(0.5 * x) + 1.0)


def discriminator_kernel(x_ref, w1_ref, b1_ref, w2_ref, b2_ref, o_ref):
    # Layer 1: (TB, 784) @ (784, 256) on the MXU, bf16 operands, f32 accumulate.
    # The cast is a no-op if x is already streamed as bf16 (preferred path).
    z1 = jnp.dot(x_ref[...].astype(jnp.bfloat16), w1_ref[...],
                 preferred_element_type=jnp.float32)
    h = _sigmoid(z1 + b1_ref[...])                        # (TB, 256), full lanes
    # Layer 2 (N = 1): skip the MXU — VPU broadcast-multiply + XLU lane reduce.
    # Zero-padded lanes of w2 contribute nothing. b2 is a scalar read from SMEM.
    z2 = jnp.sum(h * w2_ref[...], axis=-1, keepdims=True) + b2_ref[0, 0]
    o_ref[...] = _sigmoid(z2).astype(o_ref.dtype)         # (TB, 1): only masked store


def prepare_params(w1, b1, w2, b2):
    """One-time parameter packing (hoisted out of the per-call forward).

    w1: (784, 200)  -- transposed vs. nn.Linear's (200, 784) storage
    b1: (1, 200)
    w2: (1, 200)    -- same layout as nn.Linear's (1, 200)
    b2: (1, 1)
    """
    pad_h = HIDDEN_PAD - HIDDEN
    w1p = jnp.pad(w1, ((0, 0), (0, pad_h))).astype(jnp.bfloat16)           # (784, 256)
    b1p = jnp.pad(b1.reshape(1, HIDDEN).astype(jnp.float32), ((0, 0), (0, pad_h)))
    w2p = jnp.pad(w2.reshape(1, HIDDEN).astype(jnp.float32), ((0, 0), (0, pad_h)))
    b2p = b2.reshape(1, 1).astype(jnp.float32)
    return w1p, b1p, w2p, b2p


@functools.partial(jax.jit, static_argnames=("block_b",))
def discriminator_forward(x, params, *, block_b=2048):
    """Forward pass of Linear(784,200)+Sigmoid+Linear(200,1)+Sigmoid.

    x:      (B, 784), f32 or bf16 (bf16 halves the streamed HBM bytes).
    params: output of `prepare_params`.
    """
    w1p, b1p, w2p, b2p = params
    B = x.shape[0]

    # ---- batch tiling -------------------------------------------------------
    align = 16 if x.dtype == jnp.bfloat16 else 8   # keep sublane-pack alignment
    if B >= block_b:
        tb = block_b
    else:
        tb = ((B + align - 1) // align) * align
    bp = ((B + tb - 1) // tb) * tb
    if bp != B:
        x = jnp.pad(x, ((0, bp - B), (0, 0)))
    grid = (bp // tb,)

    out = pl.pallas_call(
        discriminator_kernel,
        out_shape=jax.ShapeDtypeStruct((bp, OUT_FEATURES), jnp.float32),
        grid=grid,
        in_specs=[
            pl.BlockSpec((tb, IN_FEATURES), lambda i: (i, 0)),          # x: streamed/pipelined
            pl.BlockSpec((IN_FEATURES, HIDDEN_PAD), lambda i: (0, 0)),  # w1: VMEM-resident
            pl.BlockSpec((1, HIDDEN_PAD), lambda i: (0, 0)),            # b1
            pl.BlockSpec((1, HIDDEN_PAD), lambda i: (0, 0)),            # w2 (row layout)
            pl.BlockSpec(memory_space=pltpu.MemorySpace.SMEM),          # b2: scalar in SMEM
        ],
        out_specs=pl.BlockSpec((tb, OUT_FEATURES), lambda i: (i, 0)),
        compiler_params=pltpu.CompilerParams(
            dimension_semantics=("parallel",),   # shard batch tiles across TCs (v7x megacore)
            vmem_limit_bytes=_VMEM_LIMIT_BYTES,  # tb=2048 also fits v5e's scoped VMEM
        ),
    )(x, w1p, b1p, w2p, b2p)
    return out[:B]


def init_params(key):
    # Mimics nn.Linear's uniform(-1/sqrt(fan_in), 1/sqrt(fan_in)) init.
    k1, k2, k3, k4 = jax.random.split(key, 4)
    bound1 = 1.0 / jnp.sqrt(IN_FEATURES)
    bound2 = 1.0 / jnp.sqrt(HIDDEN)
    w1 = jax.random.uniform(k1, (IN_FEATURES, HIDDEN), jnp.float32, -bound1, bound1)
    b1 = jax.random.uniform(k2, (1, HIDDEN), jnp.float32, -bound1, bound1)
    w2 = jax.random.uniform(k3, (1, HIDDEN), jnp.float32, -bound2, bound2)
    b2 = jax.random.uniform(k4, (1, 1), jnp.float32, -bound2, bound2)
    return w1, b1, w2, b2


def reference_forward(x, w1, b1, w2, b2):
    h = jax.nn.sigmoid(jnp.dot(x, w1, precision=jax.lax.Precision.HIGHEST) + b1)
    return jax.nn.sigmoid(jnp.dot(h, w2.T, precision=jax.lax.Precision.HIGHEST) + b2)


if __name__ == "__main__":
    key = jax.random.PRNGKey(0)
    kx, kp = jax.random.split(key)

    w1, b1, w2, b2 = init_params(kp)
    params = prepare_params(w1, b1, w2, b2)   # one-time packing, reused per call

    # 1) Small-batch f32 path (MNIST-like pixels in [0, 1)).
    B = 8
    x = jax.random.uniform(kx, (B, IN_FEATURES), jnp.float32)
    out = jax.block_until_ready(discriminator_forward(x, params))
    assert out.shape == (B, OUT_FEATURES)

    ref = reference_forward(x, w1, b1, w2, b2)
    ref_bf16 = reference_forward(
        x.astype(jnp.bfloat16).astype(jnp.float32),
        w1.astype(jnp.bfloat16).astype(jnp.float32), b1, w2, b2)
    assert jnp.allclose(out, ref_bf16, atol=2e-4), "mismatch vs bf16-matched reference"
    assert jnp.allclose(out, ref, atol=1e-2), "mismatch vs f32 reference"

    # 2) Multi-tile grid + batch-padding path (non-multiple batch, f32 stream).
    B2 = 300
    x2 = jax.random.uniform(kx, (B2, IN_FEATURES), jnp.float32)
    out2 = jax.block_until_ready(discriminator_forward(x2, params, block_b=128))
    ref2 = reference_forward(x2, w1, b1, w2, b2)
    assert out2.shape == (B2, OUT_FEATURES)
    assert jnp.allclose(out2, ref2, atol=1e-2), "mismatch vs f32 reference (tiled)"

    # 3) bf16 x-streaming path (halved HBM bytes; used when bf16 x is free).
    B3 = 256
    x3 = jax.random.uniform(kx, (B3, IN_FEATURES), jnp.float32).astype(jnp.bfloat16)
    out3 = jax.block_until_ready(discriminator_forward(x3, params, block_b=128))
    ref3 = reference_forward(
        x3.astype(jnp.float32),
        w1.astype(jnp.bfloat16).astype(jnp.float32), b1, w2, b2)
    assert out3.shape == (B3, OUT_FEATURES)
    assert jnp.allclose(out3, ref3, atol=1e-3), "mismatch vs bf16-x reference"

    # TODO(synk): training utilities (MSELoss, SGD step, progress plotting) are
    # host-side training logic, not part of the forward pass, and are not ported.
    print("KERNEL_OK")
</pallas_src>

<mosaic_0001>
module attributes {stable_mosaic.version = 11 : i64} {
  func.func @discriminator_kernel(%arg0: i32, %arg1: memref<8x784xf32, #tpu.memory_space<vmem>>, %arg2: memref<784x256xbf16, #tpu.memory_space<vmem>>, %arg3: memref<1x256xf32, #tpu.memory_space<vmem>>, %arg4: memref<1x256xf32, #tpu.memory_space<vmem>>, %arg5: memref<1x1xf32, #tpu.memory_space<smem>>, %arg6: memref<8x1xf32, #tpu.memory_space<vmem>>) attributes {dimension_semantics = [#tpu.dimension_semantics<parallel>], iteration_bounds = array<i64: 1>, scalar_prefetch = 0 : i64, scratch_operands = 0 : i64, tpu.core_type = #tpu.core_type<tc>, window_params = [{transform_indices = @transform_0, window_bounds = array<i64: 8, 784>}, {pipeline_mode = #tpu.pipeline_mode<synchronous>, transform_indices = @transform_1, window_bounds = array<i64: 784, 256>}, {pipeline_mode = #tpu.pipeline_mode<synchronous>, transform_indices = @transform_2, window_bounds = array<i64: 1, 256>}, {pipeline_mode = #tpu.pipeline_mode<synchronous>, transform_indices = @transform_3, window_bounds = array<i64: 1, 256>}, {transform_indices = @transform_4, window_bounds = array<i64: 1, 1>}, {transform_indices = @transform_5, window_bounds = array<i64: 8, 1>}]} {
    %c0 = arith.constant 0 : index
    %c0_0 = arith.constant 0 : index
    %0 = vector.load %arg1[%c0, %c0_0] : memref<8x784xf32, #tpu.memory_space<vmem>>, vector<8x784xf32>
    %1 = arith.truncf %0 : vector<8x784xf32> to vector<8x784xbf16>
    %c0_1 = arith.constant 0 : index
    %c0_2 = arith.constant 0 : index
    %2 = vector.load %arg2[%c0_1, %c0_2] : memref<784x256xbf16, #tpu.memory_space<vmem>>, vector<784x256xbf16>
    %cst = arith.constant dense<0.000000e+00> : vector<8x256xf32>
    %3 = tpu.matmul %1, %2, %cst {dimension_numbers = #tpu.dot_dimension_numbers<[1], [0], [0], [1], [0, 0, 1, 1], [], []>} : vector<8x784xbf16>, vector<784x256xbf16>, vector<8x256xf32> -> vector<8x256xf32>
    %c0_3 = arith.constant 0 : index
    %c0_4 = arith.constant 0 : index
    %4 = vector.load %arg3[%c0_3, %c0_4] : memref<1x256xf32, #tpu.memory_space<vmem>>, vector<1x256xf32>
    %5 = vector.broadcast %4 : vector<1x256xf32> to vector<8x256xf32>
    %6 = arith.addf %3, %5 : vector<8x256xf32>
    %cst_5 = arith.constant 5.000000e-01 : f32
    %7 = vector.broadcast %cst_5 : f32 to vector<8x256xf32>
    %8 = arith.mulf %7, %6 : vector<8x256xf32>
    %9 = math.tanh %8 : vector<8x256xf32>
    %cst_6 = arith.constant 1.000000e+00 : f32
    %10 = vector.broadcast %cst_6 : f32 to vector<8x256xf32>
    %11 = arith.addf %9, %10 : vector<8x256xf32>
    %cst_7 = arith.constant 5.000000e-01 : f32
    %12 = vector.broadcast %cst_7 : f32 to vector<8x256xf32>
    %13 = arith.mulf %12, %11 : vector<8x256xf32>
    %c0_8 = arith.constant 0 : index
    %c0_9 = arith.constant 0 : index
    %14 = vector.load %arg4[%c0_8, %c0_9] : memref<1x256xf32, #tpu.memory_space<vmem>>, vector<1x256xf32>
    %15 = vector.broadcast %14 : vector<1x256xf32> to vector<8x256xf32>
    %16 = arith.mulf %13, %15 : vector<8x256xf32>
    %cst_10 = arith.constant dense<0.000000e+00> : vector<8xf32>
    %17 = vector.multi_reduction <add>, %16, %cst_10 [1] : vector<8x256xf32> to vector<8xf32>
    %18 = vector.shape_cast %17 : vector<8xf32> to vector<8x1xf32>
    %c0_11 = arith.constant 0 : index
    %c0_12 = arith.constant 0 : index
    %19 = memref.load %arg5[%c0_11, %c0_12] : memref<1x1xf32, #tpu.memory_space<smem>>
    %20 = vector.broadcast %19 : f32 to vector<8x1xf32>
    %21 = arith.addf %18, %20 : vector<8x1xf32>
    %cst_13 = arith.constant 5.000000e-01 : f32
    %22 = vector.broadcast %cst_13 : f32 to vector<8x1xf32>
    %23 = arith.mulf %22, %21 : vector<8x1xf32>
    %24 = math.tanh %23 : vector<8x1xf32>
    %cst_14 = arith.constant 1.000000e+00 : f32
    %25 = vector.broadcast %cst_14 : f32 to vector<8x1xf32>
    %26 = arith.addf %24, %25 : vector<8x1xf32>
    %cst_15 = arith.constant 5.000000e-01 : f32
    %27 = vector.broadcast %cst_15 : f32 to vector<8x1xf32>
    %28 = arith.mulf %27, %26 : vector<8x1xf32>
    %c0_16 = arith.constant 0 : index
    %c0_17 = arith.constant 0 : index
    %29 = vector.load %arg6[%c0_16, %c0_17] : memref<8x1xf32, #tpu.memory_space<vmem>>, vector<8x1xf32>
    tpu.vector_store %arg6[%c0_16, %c0_17], %28 {strides = array<i32>} : memref<8x1xf32, #tpu.memory_space<vmem>>, vector<8x1xf32>,
    return
  }
  func.func @transform_0(%arg0: i32) -> (i32, i32) {
    %c0_i32 = arith.constant 0 : i32
    %c0_i32_0 = arith.constant 0 : i32
    return %arg0, %c0_i32 : i32, i32
  }
  func.func @transform_1(%arg0: i32) -> (i32, i32) {
    %c0_i32 = arith.constant 0 : i32
    %c0_i32_0 = arith.constant 0 : i32
    %c0_i32_1 = arith.constant 0 : i32
    return %c0_i32, %c0_i32_0 : i32, i32
  }
  func.func @transform_2(%arg0: i32) -> (i32, i32) {
    %c0_i32 = arith.constant 0 : i32
    %c0_i32_0 = arith.constant 0 : i32
    %c0_i32_1 = arith.constant 0 : i32
    return %c0_i32, %c0_i32_0 : i32, i32
  }
  func.func @transform_3(%arg0: i32) -> (i32, i32) {
    %c0_i32 = arith.constant 0 : i32
    %c0_i32_0 = arith.constant 0 : i32
    %c0_i32_1 = arith.constant 0 : i32
    return %c0_i32, %c0_i32_0 : i32, i32
  }
  func.func @transform_4(%arg0: i32) -> (i32, i32) {
    %c0_i32 = arith.constant 0 : i32
    %c0_i32_0 = arith.constant 0 : i32
    %c0_i32_1 = arith.constant 0 : i32
    return %c0_i32, %c0_i32_0 : i32, i32
  }
  func.func @transform_5(%arg0: i32) -> (i32, i32) {
    %c0_i32 = arith.constant 0 : i32
    %c0_i32_0 = arith.constant 0 : i32
    return %arg0, %c0_i32 : i32, i32
  }
}

</mosaic_0001>

<llo_original>
// kernel: discriminator_forward.1
$region0: #{discriminator_forward.1}
  #allocation0 [shape = 'u32[]', space=smem, size = 0x4, offset = 0x4, fixed_abs, tag = 'smem constant byte address 0x4 - core index']
  #allocation1 [shape = 'u32[144,128]{1,0:T(1,128)}', space=vmem, size = 0x12000, scoped, tag = 'internal scratch']
  #allocation2 [shape = 'f32[1,1]{1,0:T(1,128)S(6)}', space=smem, size = 0x200, scoped, tag = 'scoped memory for discriminator_forward.1']
  %s0 = inlined_call_operand.hbm [shape: f32[8,784], index: 0, kind: input, shape index: {}]
  %s1 = inlined_call_operand.hbm [shape: bf16[784,256], index: 1, kind: input, shape index: {}]
  %s2 = inlined_call_operand.vmem [shape: f32[1,256], index: 2, kind: input, shape index: {}]
  %s3 = inlined_call_operand.vmem [shape: f32[1,256], index: 3, kind: input, shape index: {}]
  %s4 = inlined_call_operand.<no memory space> [shape: f32[1,1], index: 4, kind: input, shape index: {}]
  %s5 = inlined_call_operand.vmem [shape: f32[8,1], index: 5, kind: output, shape index: {}]
  %s6 = sld [smem:[#allocation0]]
  $region38: #{discriminator_forward.1} parent=0
    _
  %s8 = ssub.s32 1, %s6
  %s9 = scalar_select 0, %s8, %s6
  %10 = sst [smem:[#allocation2]] %s4
  $region1: #{discriminator_forward.1} parent=0
    #allocation3 [shape = 'u8[28672]{0}', space=vmem, size = 0x7000, scoped, tag = 'input window, operand 0, single buffered']
    #allocation4 [shape = 's32[1]{0}', space=sflag, size = 0x4, scoped, tag = 'scoped memory for discriminator_forward.1']
    #allocation5 [shape = 'u8[401408]{0}', space=vmem, size = 0x62000, scoped, tag = 'input window, operand 1, single buffered']
    #allocation6 [shape = 's32[1]{0}', space=sflag, size = 0x4, scoped, tag = 'scoped memory for discriminator_forward.1']
    %11 = vsyncpa [#allocation4], 0
    %12 = vsyncpa [#allocation6], 0
    // Predicated region
    $region2: #{discriminator_forward.1} parent=1 // pred_check
      _
    $region3: #{discriminator_forward.1} parent=1 // pred_check_branch
      %14 = sbr.rel (0) target = $region5
    $region4: #{discriminator_forward.1} parent=1 // pred_region
      %s16 = ssub.s32 896, 896
      %17 = vsyncadd [#allocation4], %s16
      %s19 = sshll.u32 [#allocation3], 4
      %s20 = int_to_ptr.vmem [resolvable:$true] %s19
      %22 = dma.hbm_to_vmem [thread:$0]  %s0, 896, %s20, [#allocation4]
    $region5: #{discriminator_forward.1} parent=1 // pred_fallthru
      _
    // Predicated region
    $region6: #{discriminator_forward.1} parent=1 // pred_check
      _
    $region7: #{discriminator_forward.1} parent=1 // pred_check_branch
      %24 = sbr.rel (0) target = $region9
    $region8: #{discriminator_forward.1} parent=1 // pred_region
      %s26 = ssub.s32 12544, 12544
      %27 = vsyncadd [#allocation6], %s26
      %s28 = sshll.u32 [#allocation5], 4
      %s29 = int_to_ptr.vmem [resolvable:$true] %s28
      %34 = dma.hbm_to_vmem [thread:$0]  %s1, 12544, %s29, [#allocation6], 128, 128, 8
    $region9: #{discriminator_forward.1} parent=1 // pred_fallthru
      _
    // Predicated region
    $region10: #{discriminator_forward.1} parent=1 // pred_check
      _
    $region11: #{discriminator_forward.1} parent=1 // pred_check_branch
      %36 = sbr.rel (0) target = $region13
    $region12: #{discriminator_forward.1} parent=1 // pred_region
      _
    $region13: #{discriminator_forward.1} parent=1 // pred_fallthru
      _
    // Predicated region
    $region14: #{discriminator_forward.1} parent=1 // pred_check
      _
    $region15: #{discriminator_forward.1} parent=1 // pred_check_branch
      %38 = sbr.rel (0) target = $region17
    $region16: #{discriminator_forward.1} parent=1 // pred_region
      _
    $region17: #{discriminator_forward.1} parent=1 // pred_fallthru
      _
    // Predicated region
    $region18: #{discriminator_forward.1} parent=1 // pred_check
      _
    $region19: #{discriminator_forward.1} parent=1 // pred_check_branch
      %40 = sbr.rel (0) target = $region21
    $region20: #{discriminator_forward.1} parent=1 // pred_region
      _
    $region21: #{discriminator_forward.1} parent=1 // pred_fallthru
      _
    // Predicated region
    $region22: #{discriminator_forward.1} parent=1 // pred_check
      _
    $region23: #{discriminator_forward.1} parent=1 // pred_check_branch
      %42 = sbr.rel (0) target = $region25
    $region24: #{discriminator_forward.1} parent=1 // pred_region
      %43 = dma.done [#allocation4], 896
    $region25: #{discriminator_forward.1} parent=1 // pred_fallthru
      _
    // Predicated region
    $region26: #{discriminator_forward.1} parent=1 // pred_check
      _
    $region27: #{discriminator_forward.1} parent=1 // pred_check_branch
      %45 = sbr.rel (0) target = $region29
    $region28: #{discriminator_forward.1} parent=1 // pred_region
      %46 = dma.done [#allocation6], 12544
    $region29: #{discriminator_forward.1} parent=1 // pred_fallthru
      _
    %v48 = vld [vmem:[#allocation3] sm:$0xff]
    %v49 = vld [vmem:[#allocation3 + $0x8] sm:$0xff]
    %v50 = vld [vmem:[#allocation3 + $0x10] sm:$0xff]
    %v51 = vld [vmem:[#allocation3 + $0x18] sm:$0xff]
    %v52 = vld [vmem:[#allocation3 + $0x20] sm:$0xff]
    %v53 = vld [vmem:[#allocation3 + $0x28] sm:$0xff]
    %v54 = vld [vmem:[#allocation3 + $0x30] sm:$0xff]
    %v55 = vpack.c.bf16 %v48, %v48
    %v56 = vpack.c.bf16 %v49, %v49
    %v57 = vpack.c.bf16 %v50, %v50
    %v58 = vpack.c.bf16 %v51, %v51
    %v59 = vpack.c.bf16 %v52, %v52
    %v60 = vpack.c.bf16 %v53, %v53
    %v61 = vpack.c.bf16 %v54, %v54
    %v62 = vld [vmem:[#allocation5] sm:$0xff]
    %v63 = vld [vmem:[#allocation5 + $0x8] sm:$0xff]
    %v64 = vld [vmem:[#allocation5 + $0x10] sm:$0xff]
    %v65 = vld [vmem:[#allocation5 + $0x18] sm:$0xff]
    %v66 = vld [vmem:[#allocation5 + $0x20] sm:$0xff]
    %v67 = vld [vmem:[#allocation5 + $0x28] sm:$0xff]
    %v68 = vld [vmem:[#allocation5 + $0x30] sm:$0xff]
    %v69 = vld [vmem:[#allocation5 + $0x38] sm:$0xff]
    %v70 = vld [vmem:[#allocation5 + $0x40] sm:$0xff]
    %v71 = vld [vmem:[#allocation5 + $0x48] sm:$0xff]
    %v72 = vld [vmem:[#allocation5 + $0x50] sm:$0xff]
    %v73 = vld [vmem:[#allocation5 + $0x58] sm:$0xff]
    %v74 = vld [vmem:[#allocation5 + $0x60] sm:$0xff]
    %v75 = vld [vmem:[#allocation5 + $0x68] sm:$0xff]
    %v76 = vld [vmem:[#allocation5 + $0x70] sm:$0xff]
    %v77 = vld [vmem:[#allocation5 + $0x78] sm:$0xff]
    %v78 = vld [vmem:[#allocation5 + $0x80] sm:$0xff]
    %v79 = vld [vmem:[#allocation5 + $0x88] sm:$0xff]
    %v80 = vld [vmem:[#allocation5 + $0x90] sm:$0xff]
    %v81 = vld [vmem:[#allocation5 + $0x98] sm:$0xff]
    %v82 = vld [vmem:[#allocation5 + $0xa0] sm:$0xff]
    %v83 = vld [vmem:[#allocation5 + $0xa8] sm:$0xff]
    %v84 = vld [vmem:[#allocation5 + $0xb0] sm:$0xff]
    %v85 = vld [vmem:[#allocation5 + $0xb8] sm:$0xff]
    %v86 = vld [vmem:[#allocation5 + $0xc0] sm:$0xff]
    %v87 = vld [vmem:[#allocation5 + $0xc8] sm:$0xff]
    %v88 = vld [vmem:[#allocation5 + $0xd0] sm:$0xff]
    %v89 = vld [vmem:[#allocation5 + $0xd8] sm:$0xff]
    %v90 = vld [vmem:[#allocation5 + $0xe0] sm:$0xff]
    %v91 = vld [vmem:[#allocation5 + $0xe8] sm:$0xff]
    %v92 = vld [vmem:[#allocation5 + $0xf0] sm:$0xff]
    %v93 = vld [vmem:[#allocation5 + $0xf8] sm:$0xff]
    %v94 = vld [vmem:[#allocation5 + $0x100] sm:$0xff]
    %v95 = vld [vmem:[#allocation5 + $0x108] sm:$0xff]
    %v96 = vld [vmem:[#allocation5 + $0x110] sm:$0xff]
    %v97 = vld [vmem:[#allocation5 + $0x118] sm:$0xff]
    %v98 = vld [vmem:[#allocation5 + $0x120] sm:$0xff]
    %v99 = vld [vmem:[#allocation5 + $0x128] sm:$0xff]
    %v100 = vld [vmem:[#allocation5 + $0x130] sm:$0xff]
    %v101 = vld [vmem:[#allocation5 + $0x138] sm:$0xff]
    %v102 = vld [vmem:[#allocation5 + $0x140] sm:$0xff]
    %v103 = vld [vmem:[#allocation5 + $0x148] sm:$0xff]
    %v104 = vld [vmem:[#allocation5 + $0x150] sm:$0xff]
    %v105 = vld [vmem:[#allocation5 + $0x158] sm:$0xff]
    %v106 = vld [vmem:[#allocation5 + $0x160] sm:$0xff]
    %v107 = vld [vmem:[#allocation5 + $0x168] sm:$0xff]
    %v108 = vld [vmem:[#allocation5 + $0x170] sm:$0xff]
    %v109 = vld [vmem:[#allocation5 + $0x178] sm:$0xff]
    %v110 = vld [vmem:[#allocation5 + $0x180] sm:$0xff]
    %v111 = vld [vmem:[#allocation5 + $0x188] sm:$0xff]
    %v112 = vld [vmem:[#allocation5 + $0x190] sm:$0xff]
    %v113 = vld [vmem:[#allocation5 + $0x198] sm:$0xff]
    %v114 = vld [vmem:[#allocation5 + $0x1a0] sm:$0xff]
    %v115 = vld [vmem:[#allocation5 + $0x1a8] sm:$0xff]
    %v116 = vld [vmem:[#allocation5 + $0x1b0] sm:$0xff]
    %v117 = vld [vmem:[#allocation5 + $0x1b8] sm:$0xff]
    %v118 = vld [vmem:[#allocation5 + $0x1c0] sm:$0xff]
    %v119 = vld [vmem:[#allocation5 + $0x1c8] sm:$0xff]
    %v120 = vld [vmem:[#allocation5 + $0x1d0] sm:$0xff]
    %v121 = vld [vmem:[#allocation5 + $0x1d8] sm:$0xff]
    %v122 = vld [vmem:[#allocation5 + $0x1e0] sm:$0xff]
    %v123 = vld [vmem:[#allocation5 + $0x1e8] sm:$0xff]
    %v124 = vld [vmem:[#allocation5 + $0x1f0] sm:$0xff]
    %v125 = vld [vmem:[#allocation5 + $0x1f8] sm:$0xff]
    %v126 = vld [vmem:[#allocation5 + $0x200] sm:$0xff]
    %v127 = vld [vmem:[#allocation5 + $0x208] sm:$0xff]
    %v128 = vld [vmem:[#allocation5 + $0x210] sm:$0xff]
    %v129 = vld [vmem:[#allocation5 + $0x218] sm:$0xff]
    %v130 = vld [vmem:[#allocation5 + $0x220] sm:$0xff]
    %v131 = vld [vmem:[#allocation5 + $0x228] sm:$0xff]
    %v132 = vld [vmem:[#allocation5 + $0x230] sm:$0xff]
    %v133 = vld [vmem:[#allocation5 + $0x238] sm:$0xff]
    %v134 = vld [vmem:[#allocation5 + $0x240] sm:$0xff]
    %v135 = vld [vmem:[#allocation5 + $0x248] sm:$0xff]
    %v136 = vld [vmem:[#allocation5 + $0x250] sm:$0xff]
    %v137 = vld [vmem:[#allocation5 + $0x258] sm:$0xff]
    %v138 = vld [vmem:[#allocation5 + $0x260] sm:$0xff]
    %v139 = vld [vmem:[#allocation5 + $0x268] sm:$0xff]
    %v140 = vld [vmem:[#allocation5 + $0x270] sm:$0xff]
    %v141 = vld [vmem:[#allocation5 + $0x278] sm:$0xff]
    %v142 = vld [vmem:[#allocation5 + $0x280] sm:$0xff]
    %v143 = vld [vmem:[#allocation5 + $0x288] sm:$0xff]
    %v144 = vld [vmem:[#allocation5 + $0x290] sm:$0xff]
    %v145 = vld [vmem:[#allocation5 + $0x298] sm:$0xff]
    %v146 = vld [vmem:[#allocation5 + $0x2a0] sm:$0xff]
    %v147 = vld [vmem:[#allocation5 + $0x2a8] sm:$0xff]
    %v148 = vld [vmem:[#allocation5 + $0x2b0] sm:$0xff]
    %v149 = vld [vmem:[#allocation5 + $0x2b8] sm:$0xff]
    %v150 = vld [vmem:[#allocation5 + $0x2c0] sm:$0xff]
    %v151 = vld [vmem:[#allocation5 + $0x2c8] sm:$0xff]
    %v152 = vld [vmem:[#allocation5 + $0x2d0] sm:$0xff]
    %v153 = vld [vmem:[#allocation5 + $0x2d8] sm:$0xff]
    %v154 = vld [vmem:[#allocation5 + $0x2e0] sm:$0xff]
    %v155 = vld [vmem:[#allocation5 + $0x2e8] sm:$0xff]
    %v156 = vld [vmem:[#allocation5 + $0x2f0] sm:$0xff]
    %v157 = vld [vmem:[#allocation5 + $0x2f8] sm:$0xff]
    %v158 = vld [vmem:[#allocation5 + $0x300] sm:$0xff]
    %v159 = vld [vmem:[#allocation5 + $0x308] sm:$0xff]
    %v160 = vld [vmem:[%s2] sm:$0x3]
    %v162 = vlaneseq
    %v163 = vshrl.u32 %v162, 7
    %v164 = vsub.s32 0, %v163
    %v165 = vrot.slane %v160, %v164
    %v166 = vlaneseq
    %v167 = vshrl.u32 %v166, 7
    %v168 = vsub.s32 1, %v167
    %v169 = vrot.slane %v160, %v168
    %v270 = vunpack.c.l.b16 %v62
    %v271 = vunpack.c.h.b16 %v62
    %v272 = vunpack.c.l.b16 %v63
    %v273 = vunpack.c.h.b16 %v63
    %v274 = vunpack.c.l.b16 %v64
    %v275 = vunpack.c.h.b16 %v64
    %v276 = vunpack.c.l.b16 %v65
    %v277 = vunpack.c.h.b16 %v65
    %v278 = vunpack.c.l.b16 %v66
    %v279 = vunpack.c.h.b16 %v66
    %v280 = vunpack.c.l.b16 %v67
    %v281 = vunpack.c.h.b16 %v67
    %v282 = vunpack.c.l.b16 %v68
    %v283 = vunpack.c.h.b16 %v68
    %v284 = vunpack.c.l.b16 %v69
    %v285 = vunpack.c.h.b16 %v69
    %v286 = vunpack.c.l.b16 %v70
    %v287 = vunpack.c.h.b16 %v70
    %v288 = vunpack.c.l.b16 %v71
    %v289 = vunpack.c.h.b16 %v71
    %v290 = vunpack.c.l.b16 %v72
    %v291 = vunpack.c.h.b16 %v72
    %v292 = vunpack.c.l.b16 %v73
    %v293 = vunpack.c.h.b16 %v73
    %v294 = vunpack.c.l.b16 %v74
    %v295 = vunpack.c.h.b16 %v74
    %v296 = vunpack.c.l.b16 %v75
    %v297 = vunpack.c.h.b16 %v75
    %v298 = vunpack.c.l.b16 %v76
    %v299 = vunpack.c.h.b16 %v76
    %v300 = vunpack.c.l.b16 %v77
    %v301 = vunpack.c.h.b16 %v77
    %v302 = vunpack.c.l.b16 %v78
    %v303 = vunpack.c.h.b16 %v78
    %v304 = vunpack.c.l.b16 %v79
    %v305 = vunpack.c.h.b16 %v79
    %v306 = vunpack.c.l.b16 %v80
    %v307 = vunpack.c.h.b16 %v80
    %v308 = vunpack.c.l.b16 %v81
    %v309 = vunpack.c.h.b16 %v81
    %v310 = vunpack.c.l.b16 %v82
    %v311 = vunpack.c.h.b16 %v82
    %v312 = vunpack.c.l.b16 %v83
    %v313 = vunpack.c.h.b16 %v83
    %v314 = vunpack.c.l.b16 %v84
    %v315 = vunpack.c.h.b16 %v84
    %v316 = vunpack.c.l.b16 %v85
    %v317 = vunpack.c.h.b16 %v85
    %v318 = vunpack.c.l.b16 %v86
    %v319 = vunpack.c.h.b16 %v86
    %v320 = vunpack.c.l.b16 %v87
    %v321 = vunpack.c.h.b16 %v87
    %v322 = vunpack.c.l.b16 %v88
    %v323 = vunpack.c.h.b16 %v88
    %v324 = vunpack.c.l.b16 %v89
    %v325 = vunpack.c.h.b16 %v89
    %v326 = vunpack.c.l.b16 %v90
    %v327 = vunpack.c.h.b16 %v90
    %v328 = vunpack.c.l.b16 %v91
    %v329 = vunpack.c.h.b16 %v91
    %v330 = vunpack.c.l.b16 %v92
    %v331 = vunpack.c.h.b16 %v92
    %v332 = vunpack.c.l.b16 %v93
    %v333 = vunpack.c.h.b16 %v93
    %v334 = vunpack.c.l.b16 %v94
    %v335 = vunpack.c.h.b16 %v94
    %v336 = vunpack.c.l.b16 %v95
    %v337 = vunpack.c.h.b16 %v95
    %v338 = vunpack.c.l.b16 %v96
    %v339 = vunpack.c.h.b16 %v96
    %v340 = vunpack.c.l.b16 %v97
    %v341 = vunpack.c.h.b16 %v97
    %v342 = vunpack.c.l.b16 %v98
    %v343 = vunpack.c.h.b16 %v98
    %v344 = vunpack.c.l.b16 %v99
    %v345 = vunpack.c.h.b16 %v99
    %v346 = vunpack.c.l.b16 %v100
    %v347 = vunpack.c.h.b16 %v100
    %v348 = vunpack.c.l.b16 %v101
    %v349 = vunpack.c.h.b16 %v101
    %v350 = vunpack.c.l.b16 %v102
    %v351 = vunpack.c.h.b16 %v102
    %v352 = vunpack.c.l.b16 %v103
    %v353 = vunpack.c.h.b16 %v103
    %v354 = vunpack.c.l.b16 %v104
    %v355 = vunpack.c.h.b16 %v104
    %v356 = vunpack.c.l.b16 %v105
    %v357 = vunpack.c.h.b16 %v105
    %v358 = vunpack.c.l.b16 %v106
    %v359 = vunpack.c.h.b16 %v106
    %v360 = vunpack.c.l.b16 %v107
    %v361 = vunpack.c.h.b16 %v107
    %v362 = vunpack.c.l.b16 %v108
    %v363 = vunpack.c.h.b16 %v108
    %v364 = vunpack.c.l.b16 %v109
    %v365 = vunpack.c.h.b16 %v109
    %v366 = vunpack.c.l.b16 %v110
    %v367 = vunpack.c.h.b16 %v110
    %v368 = vunpack.c.l.b16 %v111
    %v369 = vunpack.c.h.b16 %v111
    %v370 = vunpack.c.l.b16 %v112
    %v371 = vunpack.c.h.b16 %v112
    %v372 = vunpack.c.l.b16 %v113
    %v373 = vunpack.c.h.b16 %v113
    %v374 = vunpack.c.l.b16 %v114
    %v375 = vunpack.c.h.b16 %v114
    %v376 = vunpack.c.l.b16 %v115
    %v377 = vunpack.c.h.b16 %v115
    %v378 = vunpack.c.l.b16 %v116
    %v379 = vunpack.c.h.b16 %v116
    %v380 = vunpack.c.l.b16 %v117
    %v381 = vunpack.c.h.b16 %v117
    %v382 = vunpack.c.l.b16 %v118
    %v383 = vunpack.c.h.b16 %v118
    %v384 = vunpack.c.l.b16 %v119
    %v385 = vunpack.c.h.b16 %v119
    %v386 = vunpack.c.l.b16 %v120
    %v387 = vunpack.c.h.b16 %v120
    %v388 = vunpack.c.l.b16 %v121
    %v389 = vunpack.c.h.b16 %v121
    %v390 = vunpack.c.l.b16 %v122
    %v391 = vunpack.c.h.b16 %v122
    %v392 = vunpack.c.l.b16 %v123
    %v393 = vunpack.c.h.b16 %v123
    %v394 = vunpack.c.l.b16 %v124
    %v395 = vunpack.c.h.b16 %v124
    %v396 = vunpack.c.l.b16 %v125
    %v397 = vunpack.c.h.b16 %v125
    %v398 = vunpack.c.l.b16 %v126
    %v399 = vunpack.c.h.b16 %v126
    %v400 = vunpack.c.l.b16 %v127
    %v401 = vunpack.c.h.b16 %v127
    %v402 = vunpack.c.l.b16 %v128
    %v403 = vunpack.c.h.b16 %v128
    %v404 = vunpack.c.l.b16 %v129
    %v405 = vunpack.c.h.b16 %v129
    %v406 = vunpack.c.l.b16 %v130
    %v407 = vunpack.c.h.b16 %v130
    %v408 = vunpack.c.l.b16 %v131
    %v409 = vunpack.c.h.b16 %v131
    %v410 = vunpack.c.l.b16 %v132
    %v411 = vunpack.c.h.b16 %v132
    %v412 = vunpack.c.l.b16 %v133
    %v413 = vunpack.c.h.b16 %v133
    %v414 = vunpack.c.l.b16 %v134
    %v415 = vunpack.c.h.b16 %v134
    %v416 = vunpack.c.l.b16 %v135
    %v417 = vunpack.c.h.b16 %v135
    %v418 = vunpack.c.l.b16 %v136
    %v419 = vunpack.c.h.b16 %v136
    %v420 = vunpack.c.l.b16 %v137
    %v421 = vunpack.c.h.b16 %v137
    %v422 = vunpack.c.l.b16 %v138
    %v423 = vunpack.c.h.b16 %v138
    %v424 = vunpack.c.l.b16 %v139
    %v425 = vunpack.c.h.b16 %v139
    %v426 = vunpack.c.l.b16 %v140
    %v427 = vunpack.c.h.b16 %v140
    %v428 = vunpack.c.l.b16 %v141
    %v429 = vunpack.c.h.b16 %v141
    %v430 = vunpack.c.l.b16 %v142
    %v431 = vunpack.c.h.b16 %v142
    %v432 = vunpack.c.l.b16 %v143
    %v433 = vunpack.c.h.b16 %v143
    %v434 = vunpack.c.l.b16 %v144
    %v435 = vunpack.c.h.b16 %v144
    %v436 = vunpack.c.l.b16 %v145
    %v437 = vunpack.c.h.b16 %v145
    %v438 = vunpack.c.l.b16 %v146
    %v439 = vunpack.c.h.b16 %v146
    %v440 = vunpack.c.l.b16 %v147
    %v441 = vunpack.c.h.b16 %v147
    %v442 = vunpack.c.l.b16 %v148
    %v443 = vunpack.c.h.b16 %v148
    %v444 = vunpack.c.l.b16 %v149
    %v445 = vunpack.c.h.b16 %v149
    %v446 = vunpack.c.l.b16 %v150
    %v447 = vunpack.c.h.b16 %v150
    %v448 = vunpack.c.l.b16 %v151
    %v449 = vunpack.c.h.b16 %v151
    %v450 = vunpack.c.l.b16 %v152
    %v451 = vunpack.c.h.b16 %v152
    %v452 = vunpack.c.l.b16 %v153
    %v453 = vunpack.c.h.b16 %v153
    %v454 = vunpack.c.l.b16 %v154
    %v455 = vunpack.c.h.b16 %v154
    %v456 = vunpack.c.l.b16 %v155
    %v457 = vunpack.c.h.b16 %v155
    %v458 = vunpack.c.l.b16 %v156
    %v459 = vunpack.c.h.b16 %v156
    %v460 = vunpack.c.l.b16 %v157
    %v461 = vunpack.c.h.b16 %v157
    %v462 = vunpack.c.l.b16 %v158
    %v463 = vunpack.c.h.b16 %v158
    %v464 = vunpack.c.l.b16 %v159
    %v465 = vunpack.c.h.b16 %v159
    %v466 = vpack.c.b16 %v272, %v270
    %v467 = vpack.c.b16 %v273, %v271
    %v468 = vpack.c.b16 %v276, %v274
    %v469 = vpack.c.b16 %v277, %v275
    %v470 = vpack.c.b16 %v280, %v278
    %v471 = vpack.c.b16 %v281, %v279
    %v472 = vpack.c.b16 %v284, %v282
    %v473 = vpack.c.b16 %v285, %v283
    %v474 = vpack.c.b16 %v288, %v286
    %v475 = vpack.c.b16 %v289, %v287
    %v476 = vpack.c.b16 %v292, %v290
    %v477 = vpack.c.b16 %v293, %v291
    %v478 = vpack.c.b16 %v296, %v294
    %v479 = vpack.c.b16 %v297, %v295
    %v480 = vpack.c.b16 %v300, %v298
    %v481 = vpack.c.b16 %v301, %v299
    %v482 = vpack.c.b16 %v304, %v302
    %v483 = vpack.c.b16 %v305, %v303
    %v484 = vpack.c.b16 %v308, %v306
    %v485 = vpack.c.b16 %v309, %v307
    %v486 = vpack.c.b16 %v312, %v310
    %v487 = vpack.c.b16 %v313, %v311
    %v488 = vpack.c.b16 %v316, %v314
    %v489 = vpack.c.b16 %v317, %v315
    %v490 = vpack.c.b16 %v320, %v318
    %v491 = vpack.c.b16 %v321, %v319
    %v492 = vpack.c.b16 %v324, %v322
    %v493 = vpack.c.b16 %v325, %v323
    %v494 = vpack.c.b16 %v328, %v326
    %v495 = vpack.c.b16 %v329, %v327
    %v496 = vpack.c.b16 %v332, %v330
    %v497 = vpack.c.b16 %v333, %v331
    %v498 = vpack.c.b16 %v336, %v334
    %v499 = vpack.c.b16 %v337, %v335
    %v500 = vpack.c.b16 %v340, %v338
    %v501 = vpack.c.b16 %v341, %v339
    %v502 = vpack.c.b16 %v344, %v342
    %v503 = vpack.c.b16 %v345, %v343
    %v504 = vpack.c.b16 %v348, %v346
    %v505 = vpack.c.b16 %v349, %v347
    %v506 = vpack.c.b16 %v352, %v350
    %v507 = vpack.c.b16 %v353, %v351
    %v508 = vpack.c.b16 %v356, %v354
    %v509 = vpack.c.b16 %v357, %v355
    %v510 = vpack.c.b16 %v360, %v358
    %v511 = vpack.c.b16 %v361, %v359
    %v512 = vpack.c.b16 %v364, %v362
    %v513 = vpack.c.b16 %v365, %v363
    %v514 = vpack.c.b16 %v368, %v366
    %v515 = vpack.c.b16 %v369, %v367
    %v516 = vpack.c.b16 %v372, %v370
    %v517 = vpack.c.b16 %v373, %v371
    %v518 = vpack.c.b16 %v376, %v374
    %v519 = vpack.c.b16 %v377, %v375
    %v520 = vpack.c.b16 %v380, %v378
    %v521 = vpack.c.b16 %v381, %v379
    %v522 = vpack.c.b16 %v384, %v382
    %v523 = vpack.c.b16 %v385, %v383
    %v524 = vpack.c.b16 %v388, %v386
    %v525 = vpack.c.b16 %v389, %v387
    %v526 = vpack.c.b16 %v392, %v390
    %v527 = vpack.c.b16 %v393, %v391
    %v528 = vpack.c.b16 %v396, %v394
    %v529 = vpack.c.b16 %v397, %v395
    %v530 = vpack.c.b16 %v400, %v398
    %v531 = vpack.c.b16 %v401, %v399
    %v532 = vpack.c.b16 %v404, %v402
    %v533 = vpack.c.b16 %v405, %v403
    %v534 = vpack.c.b16 %v408, %v406
    %v535 = vpack.c.b16 %v409, %v407
    %v536 = vpack.c.b16 %v412, %v410
    %v537 = vpack.c.b16 %v413, %v411
    %v538 = vpack.c.b16 %v416, %v414
    %v539 = vpack.c.b16 %v417, %v415
    %v540 = vpack.c.b16 %v420, %v418
    %v541 = vpack.c.b16 %v421, %v419
    %v542 = vpack.c.b16 %v424, %v422
    %v543 = vpack.c.b16 %v425, %v423
    %v544 = vpack.c.b16 %v428, %v426
    %v545 = vpack.c.b16 %v429, %v427
    %v546 = vpack.c.b16 %v432, %v430
    %v547 = vpack.c.b16 %v433, %v431
    %v548 = vpack.c.b16 %v436, %v434
    %v549 = vpack.c.b16 %v437, %v435
    %v550 = vpack.c.b16 %v440, %v438
    %v551 = vpack.c.b16 %v441, %v439
    %v552 = vpack.c.b16 %v444, %v442
    %v553 = vpack.c.b16 %v445, %v443
    %v554 = vpack.c.b16 %v448, %v446
    %v555 = vpack.c.b16 %v449, %v447
    %v556 = vpack.c.b16 %v452, %v450
    %v557 = vpack.c.b16 %v453, %v451
    %v558 = vpack.c.b16 %v456, %v454
    %v559 = vpack.c.b16 %v457, %v455
    %v560 = vpack.c.b16 %v460, %v458
    %v561 = vpack.c.b16 %v461, %v459
    %v562 = vpack.c.b16 %v464, %v462
    %v563 = vpack.c.b16 %v465, %v463
    %vm662 = vcmask 130048
    %v664 = vsel %vm662, %v61, 0
    %666 = vmatprep.subr.bf16.mxu0 %v467
    %667 = vmatpush1.bf16.msra.mxu0 %v466
    %668 = vmatprep.subr.bf16.mxu0 %v469
    %669 = vmatpush1.bf16.msra.mxu0 %v468
    %670 = vmatprep.subr.bf16.mxu0 %v471
    %671 = vmatpush1.bf16.msra.mxu0 %v470
    %672 = vmatprep.subr.bf16.mxu0 %v473
    %673 = vmatpush1.bf16.msra.mxu0 %v472
    %674 = vmatprep.subr.bf16.mxu0 %v475
    %675 = vmatpush1.bf16.msra.mxu0 %v474
    %676 = vmatprep.subr.bf16.mxu0 %v477
    %677 = vmatpush1.bf16.msra.mxu0 %v476
    %678 = vmatprep.subr.bf16.mxu0 %v479
    %679 = vmatpush1.bf16.msra.mxu0 %v478
    %680 = vmatprep.subr.bf16.mxu0 %v481
    %681 = vmatpush1.bf16.msra.mxu0 %v480
    %682 = vmatprep.subr.bf16.mxu0 %v483
    %683 = vmatpush1.bf16.msra.mxu0 %v482
    %684 = vmatprep.subr.bf16.mxu0 %v485
    %685 = vmatpush1.bf16.msra.mxu0 %v484
    %686 = vmatprep.subr.bf16.mxu0 %v487
    %687 = vmatpush1.bf16.msra.mxu0 %v486
    %688 = vmatprep.subr.bf16.mxu0 %v489
    %689 = vmatpush1.bf16.msra.mxu0 %v488
    %690 = vmatprep.subr.bf16.mxu0 %v491
    %691 = vmatpush1.bf16.msra.mxu0 %v490
    %692 = vmatprep.subr.bf16.mxu0 %v493
    %693 = vmatpush1.bf16.msra.mxu0 %v492
    %694 = vmatprep.subr.bf16.mxu0 %v495
    %695 = vmatpush1.bf16.msra.mxu0 %v494
    %696 = vmatprep.subr.bf16.mxu0 %v497
    %697 = vmatpush1.bf16.msra.mxu0 %v496
    %698 = vmatprep.mubr.bf16.mxu0 %v56
    %699 = vmatmul.mubr.bf16.gmra.mrb[0].mxu0 %v55
    %v700 = vpop.f32.mrb[0].mxu0
    %v701 = vadd.f32 %v165, %v700
    %v702 = vpop.f32.mrb[0].mxu0
    %v703 = vadd.f32 %v169, %v702
    %v704 = vpop.f32.mrb[0].mxu0
    %v705 = vpop.f32.mrb[0].mxu0
    %706 = vdwg.mxu0
    %707 = vmatprep.subr.bf16.mxu0 %v499
    %708 = vmatpush1.bf16.msra.mxu0 %v498
    %709 = vmatprep.subr.bf16.mxu0 %v501
    %710 = vmatpush1.bf16.msra.mxu0 %v500
    %711 = vmatprep.subr.bf16.mxu0 %v503
    %712 = vmatpush1.bf16.msra.mxu0 %v502
    %713 = vmatprep.subr.bf16.mxu0 %v505
    %714 = vmatpush1.bf16.msra.mxu0 %v504
    %715 = vmatprep.subr.bf16.mxu0 %v507
    %716 = vmatpush1.bf16.msra.mxu0 %v506
    %717 = vmatprep.subr.bf16.mxu0 %v509
    %718 = vmatpush1.bf16.msra.mxu0 %v508
    %719 = vmatprep.subr.bf16.mxu0 %v511
    %720 = vmatpush1.bf16.msra.mxu0 %v510
    %721 = vmatprep.subr.bf16.mxu0 %v513
    %722 = vmatpush1.bf16.msra.mxu0 %v512
    %723 = vmatprep.subr.bf16.mxu0 %v515
    %724 = vmatpush1.bf16.msra.mxu0 %v514
    %725 = vmatprep.subr.bf16.mxu0 %v517
    %726 = vmatpush1.bf16.msra.mxu0 %v516
    %727 = vmatprep.subr.bf16.mxu0 %v519
    %728 = vmatpush1.bf16.msra.mxu0 %v518
    %729 = vmatprep.subr.bf16.mxu0 %v521
    %730 = vmatpush1.bf16.msra.mxu0 %v520
    %731 = vmatprep.subr.bf16.mxu0 %v523
    %732 = vmatpush1.bf16.msra.mxu0 %v522
    %733 = vmatprep.subr.bf16.mxu0 %v525
    %734 = vmatpush1.bf16.msra.mxu0 %v524
    %735 = vmatprep.subr.bf16.mxu0 %v527
    %736 = vmatpush1.bf16.msra.mxu0 %v526
    %737 = vmatprep.subr.bf16.mxu0 %v529
    %738 = vmatpush1.bf16.msra.mxu0 %v528
    %739 = vmatprep.mubr.bf16.mxu0 %v58
    %740 = vmatmul.mubr.bf16.gmra.mrb[0].mxu0 %v57
    %v741 = vpop.f32.mrb[0].mxu0
    %v742 = vadd.f32 %v701, %v741
    %v743 = vpop.f32.mrb[0].mxu0
    %v744 = vadd.f32 %v703, %v743
    %v745 = vpop.f32.mrb[0].mxu0
    %v746 = vpop.f32.mrb[0].mxu0
    %747 = vdwg.mxu0
    %748 = vmatprep.subr.bf16.mxu0 %v531
    %749 = vmatpush1.bf16.msra.mxu0 %v530
    %750 = vmatprep.subr.bf16.mxu0 %v533
    %751 = vmatpush1.bf16.msra.mxu0 %v532
    %752 = vmatprep.subr.bf16.mxu0 %v535
    %753 = vmatpush1.bf16.msra.mxu0 %v534
    %754 = vmatprep.subr.bf16.mxu0 %v537
    %755 = vmatpush1.bf16.msra.mxu0 %v536
    %756 = vmatprep.subr.bf16.mxu0 %v539
    %757 = vmatpush1.bf16.msra.mxu0 %v538
    %758 = vmatprep.subr.bf16.mxu0 %v541
    %759 = vmatpush1.bf16.msra.mxu0 %v540
    %760 = vmatprep.subr.bf16.mxu0 %v543
    %761 = vmatpush1.bf16.msra.mxu0 %v542
    %762 = vmatprep.subr.bf16.mxu0 %v545
    %763 = vmatpush1.bf16.msra.mxu0 %v544
    %764 = vmatprep.subr.bf16.mxu0 %v547
    %765 = vmatpush1.bf16.msra.mxu0 %v546
    %766 = vmatprep.subr.bf16.mxu0 %v549
    %767 = vmatpush1.bf16.msra.mxu0 %v548
    %768 = vmatprep.subr.bf16.mxu0 %v551
    %769 = vmatpush1.bf16.msra.mxu0 %v550
    %770 = vmatprep.subr.bf16.mxu0 %v553
    %771 = vmatpush1.bf16.msra.mxu0 %v552
    %772 = vmatprep.subr.bf16.mxu0 %v555
    %773 = vmatpush1.bf16.msra.mxu0 %v554
    %774 = vmatprep.subr.bf16.mxu0 %v557
    %775 = vmatpush1.bf16.msra.mxu0 %v556
    %776 = vmatprep.subr.bf16.mxu0 %v559
    %777 = vmatpush1.bf16.msra.mxu0 %v558
    %778 = vmatprep.subr.bf16.mxu0 %v561
    %779 = vmatpush1.bf16.msra.mxu0 %v560
    %780 = vmatprep.mubr.bf16.mxu0 %v60
    %781 = vmatmul.mubr.bf16.gmra.mrb[0].mxu0 %v59
    %v782 = vpop.f32.mrb[0].mxu0
    %v783 = vadd.f32 %v742, %v782
    %v784 = vpop.f32.mrb[0].mxu0
    %v785 = vadd.f32 %v744, %v784
    %v786 = vpop.f32.mrb[0].mxu0
    %v787 = vpop.f32.mrb[0].mxu0
    %788 = vdwg.mxu0
    %789 = vmatprep.subr.bf16.mxu0 %v563
    %790 = vmatpush1.bf16.msra.mxu0 %v562
    %791 = vmatprep.subr.bf16.mxu0 0
    %792 = vmatpush1.bf16.msra.mxu0 0
    %793 = vmatprep.subr.bf16.mxu0 0
    %794 = vmatpush1.bf16.msra.mxu0 0
    %795 = vmatprep.subr.bf16.mxu0 0
    %796 = vmatpush1.bf16.msra.mxu0 0
    %797 = vmatprep.subr.bf16.mxu0 0
    %798 = vmatpush1.bf16.msra.mxu0 0
    %799 = vmatprep.subr.bf16.mxu0 0
    %800 = vmatpush1.bf16.msra.mxu0 0
    %801 = vmatprep.subr.bf16.mxu0 0
    %802 = vmatpush1.bf16.msra.mxu0 0
    %803 = vmatprep.subr.bf16.mxu0 0
    %804 = vmatpush1.bf16.msra.mxu0 0
    %805 = vmatprep.subr.bf16.mxu0 0
    %806 = vmatpush1.bf16.msra.mxu0 0
    %807 = vmatprep.subr.bf16.mxu0 0
    %808 = vmatpush1.bf16.msra.mxu0 0
    %809 = vmatprep.subr.bf16.mxu0 0
    %810 = vmatpush1.bf16.msra.mxu0 0
    %811 = vmatprep.subr.bf16.mxu0 0
    %812 = vmatpush1.bf16.msra.mxu0 0
    %813 = vmatprep.subr.bf16.mxu0 0
    %814 = vmatpush1.bf16.msra.mxu0 0
    %815 = vmatprep.subr.bf16.mxu0 0
    %816 = vmatpush1.bf16.msra.mxu0 0
    %817 = vmatprep.subr.bf16.mxu0 0
    %818 = vmatpush1.bf16.msra.mxu0 0
    %819 = vmatprep.subr.bf16.mxu0 0
    %820 = vmatpush1.bf16.msra.mxu0 0
    %821 = vmatprep.mubr.bf16.mxu0 0
    %822 = vmatmul.mubr.bf16.gmra.mrb[0].mxu0 %v664
    %v823 = vpop.f32.mrb[0].mxu0
    %v824 = vadd.f32 %v783, %v823
    %v825 = vpop.f32.mrb[0].mxu0
    %v826 = vadd.f32 %v785, %v825
    %v827 = vpop.f32.mrb[0].mxu0
    %v828 = vpop.f32.mrb[0].mxu0
    %829 = vdwg.mxu0
    %v830 = vmul.f32 %v824, 0.5
    %v831 = vmul.f32 %v826, 0.5
    %v832 = vtanh.pop %v830
    %v833 = vtanh.pop %v831
    %v834 = vadd.f32 %v832, 1.0
    %v835 = vadd.f32 %v833, 1.0
    %v836 = vmul.f32 %v834, 0.5
    %v837 = vmul.f32 %v835, 0.5
    %v838 = vld [vmem:[%s3] sm:$0x3]
    %v840 = vlaneseq
    %v841 = vshrl.u32 %v840, 7
    %v842 = vsub.s32 0, %v841
    %v843 = vrot.slane %v838, %v842
    %v844 = vlaneseq
    %v845 = vshrl.u32 %v844, 7
    %v846 = vsub.s32 1, %v845
    %v847 = vrot.slane %v838, %v846
    %v850 = vmul.f32 %v836, %v843
    %v851 = vmul.f32 %v837, %v847
    %v852 = vadd.f32 %v850, %v851
    %853 = vadd.xlane.f32.xlu0 %v852
    %v854 = vpop.xlane.xlu0 %853
    %s855 = sld [smem:[#allocation2]]
    %v856 = vstv %s855
    %v857 = vadd.f32 %v854, %v856
    %v858 = vmul.f32 %v857, 0.5
    %v859 = vtanh.pop %v858
    %v860 = vadd.f32 %v859, 1.0
    %v861 = vmul.f32 %v860, 0.5
    %vm862 = vcmask 7168
    %863 = vst.msk [vmem:[%s5] sm:$0xff] %vm862, %v861
    // Predicated region
    $region30: #{discriminator_forward.1} parent=1 // pred_check
      _
    $region31: #{discriminator_forward.1} parent=1 // pred_check_branch
      %865 = sbr.rel (0) target = $region33
    $region32: #{discriminator_forward.1} parent=1 // pred_region
      _
    $region33: #{discriminator_forward.1} parent=1 // pred_fallthru
      _
    // Predicated region
    $region34: #{discriminator_forward.1} parent=1 // pred_check
      _
    $region35: #{discriminator_forward.1} parent=1 // pred_check_branch
      %867 = sbr.rel (0) target = $region37
    $region36: #{discriminator_forward.1} parent=1 // pred_region
      _
    $region37: #{discriminator_forward.1} parent=1 // pred_fallthru
      _
    %868 = vsyncpa [#allocation4], 1
    %869 = vsyncpa [#allocation6], 1

</llo_original>
